<compile_context>
chip_gen: v6e
topology: v6e:2x2x1
jax: 0.10.0
libtpu: 0.0.40
codegen_flags: <defaults>
</compile_context>

<pallas_src>
import functools

import jax
import jax.numpy as jnp
from jax.experimental import pallas as pl
from jax.experimental.pallas import tpu as pltpu

LEAKY_SLOPE = 0.01
BN_EPS = 1e-5
LANE = 128      # lane multiple for feature/hidden padding (vreg / MXU width)
SUBL = 8        # f32 sublane multiple
NCORES = 2      # explicit per-core split of the stats passes (megacore on v7x)


def _round_up(n, m):
    return ((n + m - 1) // m) * m


def _leaky_relu(h):
    # max(h, 0.01*h) == LeakyReLU(h) since 0 < slope < 1
    return jnp.maximum(h, LEAKY_SLOPE * h)


# -------- pass 1: batch sum / sum-of-squares of x (BN1 statistics) -----------
def _input_stats_kernel(x_ref, sum_ref, sq_ref):
    i = pl.program_id(1)

    @pl.when(i == 0)
    def _():
        sum_ref[...] = jnp.zeros_like(sum_ref)
        sq_ref[...] = jnp.zeros_like(sq_ref)

    x = x_ref[...].astype(jnp.float32)
    # Padded batch rows / feature lanes of x are exact zeros (jnp.pad in the
    # wrapper), so they contribute nothing to the sums -> no row mask needed.
    sum_ref[...] += jnp.sum(x, axis=0, keepdims=True)
    sq_ref[...] += jnp.sum(x * x, axis=0, keepdims=True)


# -- pass 2: batch sum / sum-of-squares of h = lrelu(bn1(x) @ w1 + b1) (BN2) ---
def _hidden_stats_kernel(x_ref, s1_ref, t1_ref, w1_ref, b1_ref, sum_ref, sq_ref,
                         *, rows_total, block_rows, tiles_per_core):
    c = pl.program_id(0)
    i = pl.program_id(1)

    @pl.when(i == 0)
    def _():
        sum_ref[...] = jnp.zeros_like(sum_ref)
        sq_ref[...] = jnp.zeros_like(sq_ref)

    x = x_ref[...].astype(jnp.float32)
    xn = x * s1_ref[...] + t1_ref[...]                       # folded BN1 (FMA)
    h = jnp.dot(xn.astype(jnp.bfloat16), w1_ref[...],
                preferred_element_type=jnp.float32) + b1_ref[...]
    h = _leaky_relu(h)

    g = c * tiles_per_core + i                               # global batch-tile index
    is_ragged = (g + 1) * block_rows > rows_total            # tile overlaps padded rows

    @pl.when(jnp.logical_not(is_ragged))
    def _():
        sum_ref[...] += jnp.sum(h, axis=0, keepdims=True)
        sq_ref[...] += jnp.sum(h * h, axis=0, keepdims=True)

    @pl.when(is_ragged)
    def _():
        row = jax.lax.broadcasted_iota(jnp.int32, (block_rows, 1), 0) + g * block_rows
        valid = (row < rows_total).astype(jnp.float32)
        hv = h * valid
        sum_ref[...] += jnp.sum(hv, axis=0, keepdims=True)
        sq_ref[...] += jnp.sum(hv * h, axis=0, keepdims=True)


# ---------------- pass 3: per-row forward (batch-tiled, parallel) -------------
def _forward_kernel(x_ref, s1_ref, t1_ref, w1_ref, b1_ref,
                    s2_ref, t2_ref, w2_ref, b2_ref, wd_ref, bd_ref,
                    mask_ref, feat_ref):
    x = x_ref[...].astype(jnp.float32)

    # encoder: BN1 (folded scale/shift) -> Linear -> LeakyReLU
    xn = x * s1_ref[...] + t1_ref[...]
    h = jnp.dot(xn.astype(jnp.bfloat16), w1_ref[...],
                preferred_element_type=jnp.float32) + b1_ref[...]
    h = _leaky_relu(h)

    # encoder: BN2 (folded) -> Linear -> LeakyReLU
    hn = h * s2_ref[...] + t2_ref[...]
    hid = jnp.dot(hn.astype(jnp.bfloat16), w2_ref[...],
                  preferred_element_type=jnp.float32) + b2_ref[...]
    hid = _leaky_relu(hid)

    # fused decoders: one (bt, 2*Fp) dot, then split into two lane-dense stores;
    # sigmoid only on the mask half (half the EUP work vs masking 2F lanes).
    y = jnp.dot(hid.astype(jnp.bfloat16), wd_ref[...],
                preferred_element_type=jnp.float32) + bd_ref[...]
    fp = y.shape[1] // 2
    mask_ref[...] = jax.nn.sigmoid(y[:, :fp]).astype(mask_ref.dtype)
    feat_ref[...] = y[:, fp:].astype(feat_ref.dtype)
    # TODO(synk): outputs could be bf16 (halves HBM writeback; biggest win on
    # v5e) if downstream consumers tolerate it.


def prepare_params(params, *, lane_multiple=LANE):
    """One-time weight prep: lane padding, bf16 casts, decoder fusion.

    Call once and reuse across forward calls so the casts / concats are not
    re-done (and re-read from HBM) on every forward.
    """
    F, H = params["w1"].shape
    Fp = _round_up(F, lane_multiple)
    Hp = _round_up(H, lane_multiple)

    def pad2(a, rows, cols):
        a = jnp.asarray(a, jnp.float32)
        return jnp.pad(a, ((0, rows - a.shape[0]), (0, cols - a.shape[1])))

    return {
        "F": F, "H": H, "Fp": Fp, "Hp": Hp,
        "w1": pad2(params["w1"], Fp, Hp).astype(jnp.bfloat16),
        "b1": pad2(params["b1"], 1, Hp),
        "w2": pad2(params["w2"], Hp, Hp).astype(jnp.bfloat16),
        "b2": pad2(params["b2"], 1, Hp),
        "wd": jnp.concatenate([pad2(params["w_mask"], Hp, Fp),
                               pad2(params["w_feat"], Hp, Fp)],
                              axis=1).astype(jnp.bfloat16),
        "bd": jnp.concatenate([pad2(params["b_mask"], 1, Fp),
                               pad2(params["b_feat"], 1, Fp)], axis=1),
        "bn1_gamma": pad2(params["bn1_gamma"], 1, Fp),
        "bn1_beta": pad2(params["bn1_beta"], 1, Fp),
        "bn2_gamma": pad2(params["bn2_gamma"], 1, Hp),
        "bn2_beta": pad2(params["bn2_beta"], 1, Hp),
    }


def _vmem_limit_bytes(bt, Fp, Hp):
    # Tight estimate: single-buffered bf16 weights + double-buffered activation
    # tiles + working-set headroom (1.5x fudge instead of a blanket 4x).
    weights = 2 * (Fp * Hp + Hp * Hp + Hp * 2 * Fp)          # bf16, single-buffered
    vecs = 4 * (4 * Fp + 6 * Hp + 4 * Fp)                    # scales/shifts/biases
    x_tiles = 2 * bt * Fp * 4                                # double-buffered input
    out_tiles = 2 * 2 * bt * Fp * 4                          # two double-buffered outputs
    working = 4 * bt * max(Hp, 2 * Fp) * 4                   # intermediates / spill headroom
    est = int(1.5 * (weights + vecs + x_tiles + out_tiles + working))

    try:
        cap = int(pltpu.get_tpu_info().vmem_capacity_bytes)
    except Exception:
        cap = 64 * 1024 * 1024
    budget = (cap * 4) // 5   # ~51 MiB on v7x (64 MiB/TC), ~102 MiB on v5e/v6e (128 MiB)
    return max(16 * 1024 * 1024, min(budget, est))


def _pretrain_forward_impl(x, prepped, *, block_b, weight_mode):
    B, F = x.shape
    Fp, Hp = prepped["Fp"], prepped["Hp"]
    assert F == prepped["F"]

    # Batch tile: multiple of 16 (bf16 sublane packing of the MXU LHS); 128 is
    # the floor for large batches, but do not over-pad tiny batches.
    bt = _round_up(min(max(block_b, 128), max(B, 16)), 16)
    tiles_per_core = pl.cdiv(pl.cdiv(B, bt), NCORES)
    nbt = NCORES * tiles_per_core
    Bp = nbt * bt

    x = jnp.asarray(x, jnp.float32)
    x = jnp.pad(x, ((0, Bp - B), (0, Fp - F)))    # zero batch rows + feature lanes

    vmem = _vmem_limit_bytes(bt, Fp, Hp)
    stats_cp = pltpu.CompilerParams(
        dimension_semantics=("parallel", "arbitrary"), vmem_limit_bytes=vmem)
    fwd_cp = pltpu.CompilerParams(
        dimension_semantics=("parallel",), vmem_limit_bytes=vmem)

    wkw = {} if weight_mode is None else {"pipeline_mode": weight_mode}

    def const2(shape):   # constant block index on the 2-D stats grid: DMA'd once
        return pl.BlockSpec(shape, lambda c, i: (0,) * len(shape), **wkw)

    def const1(shape):   # constant block index on the 1-D forward grid
        return pl.BlockSpec(shape, lambda i: (0,) * len(shape), **wkw)

    x_spec2 = pl.BlockSpec((bt, Fp), lambda c, i: (c * tiles_per_core + i, 0))
    stat_out = lambda cols: pl.BlockSpec((SUBL, cols), lambda c, i: (c, 0))
    stat_shape = lambda cols: jax.ShapeDtypeStruct((NCORES * SUBL, cols), jnp.float32)

    # ---- pass 1: BN1 batch statistics (per-core partials, reduced below) ----
    sum1, sq1 = pl.pallas_call(
        _input_stats_kernel,
        grid=(NCORES, tiles_per_core),
        in_specs=[x_spec2],
        out_specs=(stat_out(Fp), stat_out(Fp)),
        out_shape=(stat_shape(Fp), stat_shape(Fp)),
        compiler_params=stats_cp,
    )(x)
    sum1 = sum1[::SUBL].sum(axis=0, keepdims=True)
    sq1 = sq1[::SUBL].sum(axis=0, keepdims=True)
    mean1 = sum1 / B
    var1 = jnp.maximum(sq1 / B - mean1 * mean1, 0.0)   # biased (training-mode) var
    # TODO(synk): E[x^2]-E[x]^2 is cancellation-prone when |mean| >> std; switch
    # to a shifted / Welford accumulation if inputs are not roughly standardized.
    s1 = prepped["bn1_gamma"] * jax.lax.rsqrt(var1 + BN_EPS)
    t1 = prepped["bn1_beta"] - mean1 * s1

    # ---- pass 2: BN2 batch statistics over h = lrelu(bn1(x) @ w1 + b1) ----
    sum2, sq2 = pl.pallas_call(
        functools.partial(_hidden_stats_kernel, rows_total=B, block_rows=bt,
                          tiles_per_core=tiles_per_core),
        grid=(NCORES, tiles_per_core),
        in_specs=[x_spec2, const2((1, Fp)), const2((1, Fp)),
                  const2((Fp, Hp)), const2((1, Hp))],
        out_specs=(stat_out(Hp), stat_out(Hp)),
        out_shape=(stat_shape(Hp), stat_shape(Hp)),
        compiler_params=stats_cp,
    )(x, s1, t1, prepped["w1"], prepped["b1"])
    sum2 = sum2[::SUBL].sum(axis=0, keepdims=True)
    sq2 = sq2[::SUBL].sum(axis=0, keepdims=True)
    mean2 = sum2 / B
    var2 = jnp.maximum(sq2 / B - mean2 * mean2, 0.0)
    s2 = prepped["bn2_gamma"] * jax.lax.rsqrt(var2 + BN_EPS)
    t2 = prepped["bn2_beta"] - mean2 * s2

    # ---- pass 3: per-row forward, pipelined over batch tiles ("parallel") ----
    out_spec = pl.BlockSpec((bt, Fp), lambda i: (i, 0))
    mask_p, feat_p = pl.pallas_call(
        _forward_kernel,
        grid=(nbt,),
        in_specs=[pl.BlockSpec((bt, Fp), lambda i: (i, 0)),
                  const1((1, Fp)), const1((1, Fp)), const1((Fp, Hp)), const1((1, Hp)),
                  const1((1, Hp)), const1((1, Hp)), const1((Hp, Hp)), const1((1, Hp)),
                  const1((Hp, 2 * Fp)), const1((1, 2 * Fp))],
        out_specs=(out_spec, out_spec),
        out_shape=(jax.ShapeDtypeStruct((Bp, Fp), jnp.float32),
                   jax.ShapeDtypeStruct((Bp, Fp), jnp.float32)),
        compiler_params=fwd_cp,
    )(x, s1, t1, prepped["w1"], prepped["b1"], s2, t2,
      prepped["w2"], prepped["b2"], prepped["wd"], prepped["bd"])
    # TODO(synk): for very large H (>= ~2048) where resident weights exceed the
    # v7x VMEM budget, add a K-tiled reduction axis over w2; and when F >= H,
    # reuse pass-2 h tiles in pass 3 instead of recomputing layer 1.

    return mask_p[:B, :F], feat_p[:B, :F]


def pretrain_forward(x, prepped, *, block_b=128):
    """x: (B, num_feat) float32. Returns (mask, feat), each (B, num_feat)."""
    try:
        # Single-buffer the VMEM-resident weights (constant block index): halves
        # their VMEM footprint. Fall back if this Pallas build rejects Buffered(1).
        return _pretrain_forward_impl(x, prepped, block_b=block_b,
                                      weight_mode=pl.Buffered(1))
    except Exception:
        return _pretrain_forward_impl(x, prepped, block_b=block_b, weight_mode=None)


def init_params(key, num_feat, num_hidden):
    """Deterministic synthetic init (shapes match PretrainModel.__init__)."""
    ks = jax.random.split(key, 8)

    def lin(kw, kb, fan_in, fan_out):
        bound = 1.0 / jnp.sqrt(fan_in)
        w = jax.random.uniform(kw, (fan_in, fan_out), jnp.float32, -bound, bound)
        b = jax.random.uniform(kb, (1, fan_out), jnp.float32, -bound, bound)
        return w, b

    w1, b1 = lin(ks[0], ks[1], num_feat, num_hidden)
    w2, b2 = lin(ks[2], ks[3], num_hidden, num_hidden)
    wm, bm = lin(ks[4], ks[5], num_hidden, num_feat)
    wf, bf = lin(ks[6], ks[7], num_hidden, num_feat)

    return {
        "bn1_gamma": jnp.ones((1, num_feat), jnp.float32),
        "bn1_beta": jnp.zeros((1, num_feat), jnp.float32),
        "w1": w1, "b1": b1,
        "bn2_gamma": jnp.ones((1, num_hidden), jnp.float32),
        "bn2_beta": jnp.zeros((1, num_hidden), jnp.float32),
        "w2": w2, "b2": b2,
        "w_mask": wm, "b_mask": bm,
        "w_feat": wf, "b_feat": bf,
    }


def _reference(x, p):
    """Pure-JAX f32 reference of the PyTorch forward (training-mode BN)."""
    def bn(h, g, b):
        m = jnp.mean(h, axis=0, keepdims=True)
        v = jnp.mean((h - m) ** 2, axis=0, keepdims=True)
        return (h - m) / jnp.sqrt(v + BN_EPS) * g + b

    def lrelu(h):
        return jnp.where(h > 0, h, LEAKY_SLOPE * h)

    h = bn(x, p["bn1_gamma"], p["bn1_beta"])
    h = lrelu(h @ p["w1"] + p["b1"])
    h = bn(h, p["bn2_gamma"], p["bn2_beta"])
    h = lrelu(h @ p["w2"] + p["b2"])
    mask = jax.nn.sigmoid(h @ p["w_mask"] + p["b_mask"])
    feat = h @ p["w_feat"] + p["b_feat"]
    return mask, feat


if __name__ == "__main__":
    # batch=37 deliberately not a tile multiple to exercise padding/masking
    batch, num_feat, num_hidden = 37, 16, 32

    key = jax.random.PRNGKey(0)
    k_x, k_p = jax.random.split(key)
    x = jax.random.normal(k_x, (batch, num_feat), jnp.float32)
    params = init_params(k_p, num_feat, num_hidden)

    prepped = prepare_params(params)            # one-time: pad / cast / fuse weights
    mask_out, feat_out = pretrain_forward(x, prepped, block_b=128)
    jax.block_until_ready((mask_out, feat_out))

    # correctness check against the pure-f32 reference (bf16 MXU => looser tol)
    mask_ref, feat_ref = _reference(x, params)
    assert mask_out.shape == (batch, num_feat) and feat_out.shape == (batch, num_feat)
    assert jnp.allclose(mask_out, mask_ref, atol=5e-2, rtol=5e-2)
    assert jnp.allclose(feat_out, feat_ref, atol=5e-2, rtol=5e-2)

    print("KERNEL_OK")
</pallas_src>

<mosaic_0001>
module attributes {stable_mosaic.version = 11 : i64} {
  func.func @_input_stats_kernel(%arg0: i32, %arg1: i32, %arg2: memref<48x128xf32, #tpu.memory_space<vmem>>, %arg3: memref<8x128xf32, #tpu.memory_space<vmem>>, %arg4: memref<8x128xf32, #tpu.memory_space<vmem>>) attributes {dimension_semantics = [#tpu.dimension_semantics<parallel>, #tpu.dimension_semantics<arbitrary>], iteration_bounds = array<i64: 2, 1>, scalar_prefetch = 0 : i64, scratch_operands = 0 : i64, tpu.core_type = #tpu.core_type<tc>, window_params = [{transform_indices = @transform_0, window_bounds = array<i64: 48, 128>}, {transform_indices = @transform_1, window_bounds = array<i64: 8, 128>}, {transform_indices = @transform_2, window_bounds = array<i64: 8, 128>}]} {
    %c0_i32 = arith.constant 0 : i32
    %0 = arith.cmpi eq, %arg1, %c0_i32 : i32
    %1 = arith.extui %0 : i1 to i32
    %c0_i32_0 = arith.constant 0 : i32
    %2 = arith.cmpi ne, %1, %c0_i32_0 : i32
    scf.if %2 {
      %cst_11 = arith.constant 0.000000e+00 : f32
      %17 = vector.broadcast %cst_11 : f32 to vector<8x128xf32>
      %c0_12 = arith.constant 0 : index
      %c0_13 = arith.constant 0 : index
      %18 = vector.load %arg3[%c0_12, %c0_13] : memref<8x128xf32, #tpu.memory_space<vmem>>, vector<8x128xf32>
      tpu.vector_store %arg3[%c0_12, %c0_13], %17 {strides = array<i32>} : memref<8x128xf32, #tpu.memory_space<vmem>>, vector<8x128xf32>,
      %cst_14 = arith.constant 0.000000e+00 : f32
      %19 = vector.broadcast %cst_14 : f32 to vector<8x128xf32>
      %c0_15 = arith.constant 0 : index
      %c0_16 = arith.constant 0 : index
      %20 = vector.load %arg4[%c0_15, %c0_16] : memref<8x128xf32, #tpu.memory_space<vmem>>, vector<8x128xf32>
      tpu.vector_store %arg4[%c0_15, %c0_16], %19 {strides = array<i32>} : memref<8x128xf32, #tpu.memory_space<vmem>>, vector<8x128xf32>,
    } else {
    }
    %c0 = arith.constant 0 : index
    %c0_1 = arith.constant 0 : index
    %3 = vector.load %arg2[%c0, %c0_1] : memref<48x128xf32, #tpu.memory_space<vmem>>, vector<48x128xf32>
    %c0_2 = arith.constant 0 : index
    %c0_3 = arith.constant 0 : index
    %4 = vector.load %arg3[%c0_2, %c0_3] : memref<8x128xf32, #tpu.memory_space<vmem>>, vector<8x128xf32>
    %cst = arith.constant dense<0.000000e+00> : vector<128xf32>
    %5 = vector.multi_reduction <add>, %3, %cst [0] : vector<48x128xf32> to vector<128xf32>
    %6 = vector.shape_cast %5 : vector<128xf32> to vector<1x128xf32>
    %7 = vector.broadcast %6 : vector<1x128xf32> to vector<8x128xf32>
    %8 = arith.addf %4, %7 : vector<8x128xf32>
    %c0_4 = arith.constant 0 : index
    %c0_5 = arith.constant 0 : index
    %9 = vector.load %arg3[%c0_4, %c0_5] : memref<8x128xf32, #tpu.memory_space<vmem>>, vector<8x128xf32>
    tpu.vector_store %arg3[%c0_4, %c0_5], %8 {strides = array<i32>} : memref<8x128xf32, #tpu.memory_space<vmem>>, vector<8x128xf32>,
    %c0_6 = arith.constant 0 : index
    %c0_7 = arith.constant 0 : index
    %10 = vector.load %arg4[%c0_6, %c0_7] : memref<8x128xf32, #tpu.memory_space<vmem>>, vector<8x128xf32>
    %11 = arith.mulf %3, %3 : vector<48x128xf32>
    %cst_8 = arith.constant dense<0.000000e+00> : vector<128xf32>
    %12 = vector.multi_reduction <add>, %11, %cst_8 [0] : vector<48x128xf32> to vector<128xf32>
    %13 = vector.shape_cast %12 : vector<128xf32> to vector<1x128xf32>
    %14 = vector.broadcast %13 : vector<1x128xf32> to vector<8x128xf32>
    %15 = arith.addf %10, %14 : vector<8x128xf32>
    %c0_9 = arith.constant 0 : index
    %c0_10 = arith.constant 0 : index
    %16 = vector.load %arg4[%c0_9, %c0_10] : memref<8x128xf32, #tpu.memory_space<vmem>>, vector<8x128xf32>
    tpu.vector_store %arg4[%c0_9, %c0_10], %15 {strides = array<i32>} : memref<8x128xf32, #tpu.memory_space<vmem>>, vector<8x128xf32>,
    return
  }
  func.func @transform_0(%arg0: i32, %arg1: i32) -> (i32, i32) {
    %c1_i32 = arith.constant 1 : i32
    %0 = arith.muli %arg0, %c1_i32 : i32
    %1 = arith.addi %0, %arg1 : i32
    %c0_i32 = arith.constant 0 : i32
    %c0_i32_0 = arith.constant 0 : i32
    return %1, %c0_i32 : i32, i32
  }
  func.func @transform_1(%arg0: i32, %arg1: i32) -> (i32, i32) {
    %c0_i32 = arith.constant 0 : i32
    %c0_i32_0 = arith.constant 0 : i32
    return %arg0, %c0_i32 : i32, i32
  }
  func.func @transform_2(%arg0: i32, %arg1: i32) -> (i32, i32) {
    %c0_i32 = arith.constant 0 : i32
    %c0_i32_0 = arith.constant 0 : i32
    return %arg0, %c0_i32 : i32, i32
  }
}

module attributes {stable_mosaic.version = 11 : i64} {
  func.func @_input_stats_kernel(%arg0: i32, %arg1: i32, %arg2: memref<48x128xf32, #tpu.memory_space<vmem>>, %arg3: memref<8x128xf32, #tpu.memory_space<vmem>>, %arg4: memref<8x128xf32, #tpu.memory_space<vmem>>) attributes {dimension_semantics = [#tpu.dimension_semantics<parallel>, #tpu.dimension_semantics<arbitrary>], iteration_bounds = array<i64: 2, 1>, scalar_prefetch = 0 : i64, scratch_operands = 0 : i64, tpu.core_type = #tpu.core_type<tc>, window_params = [{transform_indices = @transform_0, window_bounds = array<i64: 48, 128>}, {transform_indices = @transform_1, window_bounds = array<i64: 8, 128>}, {transform_indices = @transform_2, window_bounds = array<i64: 8, 128>}]} {
    %c0_i32 = arith.constant 0 : i32
    %0 = arith.cmpi eq, %arg1, %c0_i32 : i32
    %1 = arith.extui %0 : i1 to i32
    %c0_i32_0 = arith.constant 0 : i32
    %2 = arith.cmpi ne, %1, %c0_i32_0 : i32
    scf.if %2 {
      %cst_11 = arith.constant 0.000000e+00 : f32
      %17 = vector.broadcast %cst_11 : f32 to vector<8x128xf32>
      %c0_12 = arith.constant 0 : index
      %c0_13 = arith.constant 0 : index
      %18 = vector.load %arg3[%c0_12, %c0_13] : memref<8x128xf32, #tpu.memory_space<vmem>>, vector<8x128xf32>
      tpu.vector_store %arg3[%c0_12, %c0_13], %17 {strides = array<i32>} : memref<8x128xf32, #tpu.memory_space<vmem>>, vector<8x128xf32>,
      %cst_14 = arith.constant 0.000000e+00 : f32
      %19 = vector.broadcast %cst_14 : f32 to vector<8x128xf32>
      %c0_15 = arith.constant 0 : index
      %c0_16 = arith.constant 0 : index
      %20 = vector.load %arg4[%c0_15, %c0_16] : memref<8x128xf32, #tpu.memory_space<vmem>>, vector<8x128xf32>
      tpu.vector_store %arg4[%c0_15, %c0_16], %19 {strides = array<i32>} : memref<8x128xf32, #tpu.memory_space<vmem>>, vector<8x128xf32>,
    } else {
    }
    %c0 = arith.constant 0 : index
    %c0_1 = arith.constant 0 : index
    %3 = vector.load %arg2[%c0, %c0_1] : memref<48x128xf32, #tpu.memory_space<vmem>>, vector<48x128xf32>
    %c0_2 = arith.constant 0 : index
    %c0_3 = arith.constant 0 : index
    %4 = vector.load %arg3[%c0_2, %c0_3] : memref<8x128xf32, #tpu.memory_space<vmem>>, vector<8x128xf32>
    %cst = arith.constant dense<0.000000e+00> : vector<128xf32>
    %5 = vector.multi_reduction <add>, %3, %cst [0] : vector<48x128xf32> to vector<128xf32>
    %6 = vector.shape_cast %5 : vector<128xf32> to vector<1x128xf32>
    %7 = vector.broadcast %6 : vector<1x128xf32> to vector<8x128xf32>
    %8 = arith.addf %4, %7 : vector<8x128xf32>
    %c0_4 = arith.constant 0 : index
    %c0_5 = arith.constant 0 : index
    %9 = vector.load %arg3[%c0_4, %c0_5] : memref<8x128xf32, #tpu.memory_space<vmem>>, vector<8x128xf32>
    tpu.vector_store %arg3[%c0_4, %c0_5], %8 {strides = array<i32>} : memref<8x128xf32, #tpu.memory_space<vmem>>, vector<8x128xf32>,
    %c0_6 = arith.constant 0 : index
    %c0_7 = arith.constant 0 : index
    %10 = vector.load %arg4[%c0_6, %c0_7] : memref<8x128xf32, #tpu.memory_space<vmem>>, vector<8x128xf32>
    %11 = arith.mulf %3, %3 : vector<48x128xf32>
    %cst_8 = arith.constant dense<0.000000e+00> : vector<128xf32>
    %12 = vector.multi_reduction <add>, %11, %cst_8 [0] : vector<48x128xf32> to vector<128xf32>
    %13 = vector.shape_cast %12 : vector<128xf32> to vector<1x128xf32>
    %14 = vector.broadcast %13 : vector<1x128xf32> to vector<8x128xf32>
    %15 = arith.addf %10, %14 : vector<8x128xf32>
    %c0_9 = arith.constant 0 : index
    %c0_10 = arith.constant 0 : index
    %16 = vector.load %arg4[%c0_9, %c0_10] : memref<8x128xf32, #tpu.memory_space<vmem>>, vector<8x128xf32>
    tpu.vector_store %arg4[%c0_9, %c0_10], %15 {strides = array<i32>} : memref<8x128xf32, #tpu.memory_space<vmem>>, vector<8x128xf32>,
    return
  }
  func.func @transform_0(%arg0: i32, %arg1: i32) -> (i32, i32) {
    %c1_i32 = arith.constant 1 : i32
    %0 = arith.muli %arg0, %c1_i32 : i32
    %1 = arith.addi %0, %arg1 : i32
    %c0_i32 = arith.constant 0 : i32
    %c0_i32_0 = arith.constant 0 : i32
    return %1, %c0_i32 : i32, i32
  }
  func.func @transform_1(%arg0: i32, %arg1: i32) -> (i32, i32) {
    %c0_i32 = arith.constant 0 : i32
    %c0_i32_0 = arith.constant 0 : i32
    return %arg0, %c0_i32 : i32, i32
  }
  func.func @transform_2(%arg0: i32, %arg1: i32) -> (i32, i32) {
    %c0_i32 = arith.constant 0 : i32
    %c0_i32_0 = arith.constant 0 : i32
    return %arg0, %c0_i32 : i32, i32
  }
}

</mosaic_0001>

<llo_original>
// kernel: tpu_custom_call.1
$region0: #{tpu_custom_call.1}
  #allocation0 [shape = 'u32[]', space=smem, size = 0x4, offset = 0x4, fixed_abs, tag = 'smem constant byte address 0x4 - core index']
  #allocation1 [shape = 'u32[144,128]{1,0:T(1,128)}', space=vmem, size = 0x12000, scoped, tag = 'internal scratch']
  %s0 = inlined_call_operand.hbm [shape: f32[96,128], index: 0, kind: input, shape index: {}]
  %s1 = inlined_call_operand.hbm [shape: f32[16,128], index: 1, kind: output, shape index: {0}]
  %s2 = inlined_call_operand.hbm [shape: f32[16,128], index: 2, kind: output, shape index: {1}]
  %3 = xla_tuple %s1, %s2
  %s4 = sld [smem:[#allocation0]]
  $region53: #{tpu_custom_call.1} parent=0
    _
  %s6 = ssub.s32 1, %s4
  %s7 = scalar_select 0, %s6, %s4
  $region1: #{tpu_custom_call.1} parent=0
    #allocation2 [shape = 'u8[49152]{0}', space=vmem, size = 0xc000, scoped, tag = 'input window, operand 0']
    #allocation3 [shape = 's32[2]{0}', space=sflag, size = 0x8, scoped, tag = 'scoped memory for tpu_custom_call.1']
    #allocation4 [shape = 's32[2]{0}', space=sflag, size = 0x8, scoped, tag = 'scoped memory for tpu_custom_call.1']
    #allocation5 [shape = 'u8[8192]{0}', space=vmem, size = 0x2000, scoped, tag = 'output window, operand 0']
    #allocation6 [shape = 'u8[8192]{0}', space=vmem, size = 0x2000, scoped, tag = 'output window, operand 1']
    #allocation7 [shape = 's32[2]{0}', space=sflag, size = 0x8, scoped, tag = 'scoped memory for tpu_custom_call.1']
    %8 = vsyncpa [#allocation3], 0
    %s9 = scalar_lea.sflag [#allocation3], 1
    %10 = vsyncpa %s9, 0
    %11 = vsyncpa [#allocation4], 0
    %s12 = scalar_lea.sflag [#allocation4], 1
    %13 = vsyncpa %s12, 0
    %14 = vsyncpa [#allocation7], 0
    %s15 = scalar_lea.sflag [#allocation7], 1
    %16 = vsyncpa %s15, 0
    loop: start=0, step=1, limit=4
    $region2: #{tpu_custom_call.1} parent=1 // loop_pre_header
      _
    $region3: #{tpu_custom_call.1} parent=1 // loop_header
      %s18 = sphi 0, %s22
      %p19 = scmp.ge.s32.totalorder %s18, 4
      %s25 = sphi 0, %s37
      %s26 = sphi 0, %s33
      %s27 = sphi 0, %s25
      %s28 = sphi 0, %s26
      %s29 = sphi 0, %s27
      %s30 = sphi 0, %s28
      %s42 = sphi 0, %s44
      %s45 = sphi 0, %s42
      %s46 = sphi 0, %s45
      %s62 = sphi 0, %s46
      %s68 = sphi 0, %s70
      %s71 = sphi 0, %s68
      %s72 = sphi 0, %s71
      %s88 = sphi 0, %s72
      %s94 = sphi 0, %s96
      %s97 = sphi 0, %s94
      %s98 = sphi 0, %s97
      %s114 = sphi 0, %s98
    $region4: #{tpu_custom_call.1} parent=1 // loop_header_branch
      %21 = sbr.rel (%p19) target = $region8
    $region5: #{tpu_custom_call.1} parent=1 // loop_body
      %s23 = ssub.s32 %s18, 1
      %s24 = ssub.s32 %s18, 2
      %s31 = sadd.s32 1, %s26
      %p32 = scmp.ge.s32.totalorder %s31, 1
      %s33 = scalar_select %p32, 0, %s31
      %s34 = sadd.s32 1, %s25
      %s35 = scalar_select %p32, %s34, %s25
      %p36 = scmp.ge.s32.totalorder %s35, 2
      %s37 = scalar_select %p36, 0, %s35
      %s38 = sadd.s32 %s25, %s26
      %s39 = sadd.s32 %s37, %s33
      %s40 = ssub.s32 %s38, %s39
      %p41 = scmp.eq.s32.totalorder %s40, 0
      %s43 = sadd.s32 %s42, 1
      %s44 = scalar_select %p41, %s42, %s43
      %p47 = pneg %p41
      %p48 = scmp.eq.s32.totalorder %s18, 1
      %p49 = por %p47, %p48
      %p50 = scmp.ne.s32.totalorder %s42, %s45
      %p51 = scmp.eq.s32.totalorder %s18, 0
      %p52 = por %p50, %p51
      %p53 = scmp.ne.s32.totalorder %s42, %s45
      %p54 = scmp.eq.s32.totalorder %s23, 1
      %p55 = por %p53, %p54
      %p56 = scmp.ne.s32.totalorder %s45, %s46
      %p57 = scmp.eq.s32.totalorder %s23, 0
      %p58 = por %p56, %p57
      %p59 = scmp.ne.s32.totalorder %s45, %s46
      %p60 = scmp.eq.s32.totalorder %s24, 1
      %p61 = por %p59, %p60
      %p63 = scmp.ne.s32.totalorder %s46, %s62
      %p64 = scmp.eq.s32.totalorder %s24, 0
      %p65 = por %p63, %p64
      %s66 = ssub.s32 %s25, %s37
      %p67 = scmp.eq.s32.totalorder %s66, 0
      %s69 = sadd.s32 %s68, 1
      %s70 = scalar_select %p67, %s68, %s69
      %p73 = pneg %p67
      %p74 = scmp.eq.s32.totalorder %s18, 1
      %p75 = por %p73, %p74
      %p76 = scmp.ne.s32.totalorder %s68, %s71
      %p77 = scmp.eq.s32.totalorder %s18, 0
      %p78 = por %p76, %p77
      %p79 = scmp.ne.s32.totalorder %s68, %s71
      %p80 = scmp.eq.s32.totalorder %s23, 1
      %p81 = por %p79, %p80
      %p82 = scmp.ne.s32.totalorder %s71, %s72
      %p83 = scmp.eq.s32.totalorder %s23, 0
      %p84 = por %p82, %p83
      %p85 = scmp.ne.s32.totalorder %s71, %s72
      %p86 = scmp.eq.s32.totalorder %s24, 1
      %p87 = por %p85, %p86
      %p89 = scmp.ne.s32.totalorder %s72, %s88
      %p90 = scmp.eq.s32.totalorder %s24, 0
      %p91 = por %p89, %p90
      %s92 = ssub.s32 %s25, %s37
      %p93 = scmp.eq.s32.totalorder %s92, 0
      %s95 = sadd.s32 %s94, 1
      %s96 = scalar_select %p93, %s94, %s95
      %p99 = pneg %p93
      %p100 = scmp.eq.s32.totalorder %s18, 1
      %p101 = por %p99, %p100
      %p102 = scmp.ne.s32.totalorder %s94, %s97
      %p103 = scmp.eq.s32.totalorder %s18, 0
      %p104 = por %p102, %p103
      %p105 = scmp.ne.s32.totalorder %s94, %s97
      %p106 = scmp.eq.s32.totalorder %s23, 1
      %p107 = por %p105, %p106
      %p108 = scmp.ne.s32.totalorder %s97, %s98
      %p109 = scmp.eq.s32.totalorder %s23, 0
      %p110 = por %p108, %p109
      %p111 = scmp.ne.s32.totalorder %s97, %s98
      %p112 = scmp.eq.s32.totalorder %s24, 1
      %p113 = por %p111, %p112
      %p115 = scmp.ne.s32.totalorder %s98, %s114
      %p116 = scmp.eq.s32.totalorder %s24, 0
      %p117 = por %p115, %p116
      %p118 = scmp.le.s32.totalorder 1, %s18
      %p119 = scmp.lt.s32.totalorder %s18, 3
      %p120 = pnand %p118, %p119
      %p121 = pneg %p120
      // Predicated region
      $region9: #{tpu_custom_call.1} parent=5 // pred_check
        _
      $region10: #{tpu_custom_call.1} parent=5 // pred_check_branch
        %123 = sbr.rel (%p120) target = $region12
      $region11: #{tpu_custom_call.1} parent=5 // pred_region
        %s124 = ssub.s32 %s18, 1
      $region12: #{tpu_custom_call.1} parent=5 // pred_fallthru
        _
      %p125 = scmp.lt.s32.totalorder %s18, 2
      // Predicated region
      $region13: #{tpu_custom_call.1} parent=5 // pred_check
        %p126 = pneg %p125
      $region14: #{tpu_custom_call.1} parent=5 // pred_check_branch
        %128 = sbr.rel (%p126) target = $region16
      $region15: #{tpu_custom_call.1} parent=5 // pred_region
        // Predicated region
        $region17: #{tpu_custom_call.1} parent=15 // pred_check
          %p129 = pneg %p52
        $region18: #{tpu_custom_call.1} parent=15 // pred_check_branch
          %131 = sbr.rel (%p129) target = $region20
        $region19: #{tpu_custom_call.1} parent=15 // pred_region
          %s132 = sand.u32 %s42, 1
          %s133 = scalar_lea.sflag [#allocation3], %s132
          %s134 = sand.u32 %s42, 1
          %s135 = smul.addr %s134, 48
          %s136 = scalar_lea.vmem [#allocation2], %s135
          %s137 = sadd.s32 %s25, %s26
          %s138 = smul.u32 6, %s137
          %s140 = ssub.s32 768, 768
          %141 = vsyncadd %s133, %s140
          %s142 = smul.addr %s138, 128
          %s143 = scalar_lea.hbm %s0, %s142
          %s144 = sshll.u32 %s136, 4
          %s145 = int_to_ptr.vmem [resolvable:$true] %s144
          %150 = dma.hbm_to_vmem [thread:$0]  %s143, 768, %s145, %s133, 128, 128, 8
        $region20: #{tpu_custom_call.1} parent=15 // pred_fallthru
          _
      $region16: #{tpu_custom_call.1} parent=5 // pred_fallthru
        _
      %p151 = scmp.le.s32.totalorder 1, %s18
      %p152 = scmp.lt.s32.totalorder %s18, 3
      %p153 = pnand %p151, %p152
      %p154 = pneg %p153
      // Predicated region
      $region21: #{tpu_custom_call.1} parent=5 // pred_check
        _
      $region22: #{tpu_custom_call.1} parent=5 // pred_check_branch
        %156 = sbr.rel (%p153) target = $region24
      $region23: #{tpu_custom_call.1} parent=5 // pred_region
        %s157 = ssub.s32 %s18, 1
        %s158 = sand.u32 %s45, 1
        %s159 = scalar_lea.sflag [#allocation3], %s158
        %s160 = sand.u32 %s45, 1
        %s161 = smul.addr %s160, 48
        %s162 = scalar_lea.vmem [#allocation2], %s161
        // Predicated region
        $region25: #{tpu_custom_call.1} parent=23 // pred_check
          %p163 = pneg %p58
        $region26: #{tpu_custom_call.1} parent=23 // pred_check_branch
          %165 = sbr.rel (%p163) target = $region28
        $region27: #{tpu_custom_call.1} parent=23 // pred_region
          %166 = dma.done %s159, 768
        $region28: #{tpu_custom_call.1} parent=23 // pred_fallthru
          _
        %s167 = sand.u32 %s45, 1
        %s168 = scalar_lea.sflag [#allocation3], %s167
        %s169 = sand.u32 %s45, 1
        %s170 = smul.addr %s169, 48
        %s171 = scalar_lea.vmem [#allocation2], %s170
        %p172 = pneg %p58
        %p173 = pneg %p55
        %p174 = pneg %p84
        %p175 = pneg %p81
        %s176 = sand.u32 %s71, 1
        %s177 = scalar_lea.sflag [#allocation4], %s176
        %s178 = sand.u32 %s71, 1
        %s179 = smul.addr %s178, 8
        %s180 = scalar_lea.vmem [#allocation5], %s179
        %p181 = pneg %p110
        %p182 = pneg %p107
        %s183 = sand.u32 %s97, 1
        %s184 = scalar_lea.sflag [#allocation7], %s183
        %s185 = sand.u32 %s97, 1
        %s186 = smul.addr %s185, 8
        %s187 = scalar_lea.vmem [#allocation6], %s186
        %s188 = sadd.s32 %s27, %s28
        %s189 = smul.u32 6, %s188
        %p190 = scmp.eq.s32.totalorder %s28, 0
        // Predicated region
        $region29: #{tpu_custom_call.1} parent=23 // pred_check
          %p191 = pneg %p190
        $region30: #{tpu_custom_call.1} parent=23 // pred_check_branch
          %193 = sbr.rel (%p191) target = $region32
        $region31: #{tpu_custom_call.1} parent=23 // pred_region
          %194 = vst [vmem:[%s180] sm:$0xff] 0.0
          %195 = vst [vmem:[%s187] sm:$0xff] 0.0
        $region32: #{tpu_custom_call.1} parent=23 // pred_fallthru
          _
        %v196 = vld [vmem:[%s162] sm:$0xff]
        %v197 = vld [vmem:[%s162 + $0x8] sm:$0xff]
        %v198 = vld [vmem:[%s162 + $0x10] sm:$0xff]
        %v199 = vld [vmem:[%s162 + $0x18] sm:$0xff]
        %v200 = vld [vmem:[%s162 + $0x20] sm:$0xff]
        %v201 = vld [vmem:[%s162 + $0x28] sm:$0xff]
        %v202 = vld [vmem:[%s180] sm:$0xff]
        %v203 = vadd.f32 %v196, %v197
        %v204 = vadd.f32 %v203, %v198
        %v205 = vadd.f32 %v204, %v199
        %v206 = vadd.f32 %v205, %v200
        %v207 = vadd.f32 %v206, %v201
        %v208 = vrot.slane %v207, 4
        %v209 = vadd.f32 %v207, %v208
        %v210 = vrot.slane %v209, 2
        %v211 = vadd.f32 %v209, %v210
        %v212 = vrot.slane %v211, 1
        %v213 = vadd.f32 %v211, %v212
        %v214 = vadd.f32 %v202, %v213
        %215 = vst [vmem:[%s180] sm:$0xff] %v214
        %v216 = vld [vmem:[%s187] sm:$0xff]
        %v217 = vmul.f32 %v196, %v196
        %v218 = vmul.f32 %v197, %v197
        %v219 = vmul.f32 %v198, %v198
        %v220 = vmul.f32 %v199, %v199
        %v221 = vmul.f32 %v200, %v200
        %v222 = vmul.f32 %v201, %v201
        %v223 = vadd.f32 %v217, %v218
        %v224 = vadd.f32 %v223, %v219
        %v225 = vadd.f32 %v224, %v220
        %v226 = vadd.f32 %v225, %v221
        %v227 = vadd.f32 %v226, %v222
        %v228 = vrot.slane %v227, 4
        %v229 = vadd.f32 %v227, %v228
        %v230 = vrot.slane %v229, 2
        %v231 = vadd.f32 %v229, %v230
        %v232 = vrot.slane %v231, 1
        %v233 = vadd.f32 %v231, %v232
        %v234 = vadd.f32 %v216, %v233
        %235 = vst [vmem:[%s187] sm:$0xff] %v234
        %s236 = sand.u32 %s71, 1
        %s237 = scalar_lea.sflag [#allocation4], %s236
        %s238 = sand.u32 %s71, 1
        %s239 = smul.addr %s238, 8
        %s240 = scalar_lea.vmem [#allocation5], %s239
        %s241 = sand.u32 %s97, 1
        %s242 = scalar_lea.sflag [#allocation7], %s241
        %s243 = sand.u32 %s97, 1
        %s244 = smul.addr %s243, 8
        %s245 = scalar_lea.vmem [#allocation6], %s244
        // Predicated region
        $region33: #{tpu_custom_call.1} parent=23 // pred_check
          %p246 = pneg %p81
        $region34: #{tpu_custom_call.1} parent=23 // pred_check_branch
          %248 = sbr.rel (%p246) target = $region36
        $region35: #{tpu_custom_call.1} parent=23 // pred_region
          %s250 = ssub.s32 128, 128
          %251 = vsyncadd %s237, %s250
          %s252 = smul.addr %s27, 128
          %s253 = scalar_lea.hbm %s1, %s252
          %s255 = sshll.u32 %s240, 4
          %s256 = int_to_ptr.vmem [resolvable:$true] %s255
          %258 = dma.vmem_to_hbm [thread:$0]  %s256, 128, %s253, %s237
        $region36: #{tpu_custom_call.1} parent=23 // pred_fallthru
          _
        // Predicated region
        $region37: #{tpu_custom_call.1} parent=23 // pred_check
          %p259 = pneg %p107
        $region38: #{tpu_custom_call.1} parent=23 // pred_check_branch
          %261 = sbr.rel (%p259) target = $region40
        $region39: #{tpu_custom_call.1} parent=23 // pred_region
          %s263 = ssub.s32 128, 128
          %264 = vsyncadd %s242, %s263
          %s265 = smul.addr %s27, 128
          %s266 = scalar_lea.hbm %s2, %s265
          %s268 = sshll.u32 %s245, 4
          %s269 = int_to_ptr.vmem [resolvable:$true] %s268
          %271 = dma.vmem_to_hbm [thread:$0]  %s269, 128, %s266, %s242
        $region40: #{tpu_custom_call.1} parent=23 // pred_fallthru
          _
      $region24: #{tpu_custom_call.1} parent=5 // pred_fallthru
        _
      %p272 = scmp.le.s32.totalorder 2, %s18
      // Predicated region
      $region41: #{tpu_custom_call.1} parent=5 // pred_check
        %p273 = pneg %p272
      $region42: #{tpu_custom_call.1} parent=5 // pred_check_branch
        %275 = sbr.rel (%p273) target = $region44
      $region43: #{tpu_custom_call.1} parent=5 // pred_region
        %s276 = ssub.s32 %s18, 2
        // Predicated region
        $region45: #{tpu_custom_call.1} parent=43 // pred_check
          %p277 = pneg %p87
        $region46: #{tpu_custom_call.1} parent=43 // pred_check_branch
          %279 = sbr.rel (%p277) target = $region48
        $region47: #{tpu_custom_call.1} parent=43 // pred_region
          %s280 = sand.u32 %s72, 1
          %s281 = scalar_lea.sflag [#allocation4], %s280
          %s282 = sand.u32 %s72, 1
          %s283 = smul.addr %s282, 8
          %s284 = scalar_lea.vmem [#allocation5], %s283
          %285 = dma.done %s281, 128
        $region48: #{tpu_custom_call.1} parent=43 // pred_fallthru
          _
        // Predicated region
        $region49: #{tpu_custom_call.1} parent=43 // pred_check
          %p286 = pneg %p113
        $region50: #{tpu_custom_call.1} parent=43 // pred_check_branch
          %288 = sbr.rel (%p286) target = $region52
        $region51: #{tpu_custom_call.1} parent=43 // pred_region
          %s289 = sand.u32 %s98, 1
          %s290 = scalar_lea.sflag [#allocation7], %s289
          %s291 = sand.u32 %s98, 1
          %s292 = smul.addr %s291, 8
          %s293 = scalar_lea.vmem [#allocation6], %s292
          %294 = dma.done %s290, 128
        $region52: #{tpu_custom_call.1} parent=43 // pred_fallthru
          _
      $region44: #{tpu_custom_call.1} parent=5 // pred_fallthru
        _
    $region6: #{tpu_custom_call.1} parent=1 // loop_footer
      %s22 = sadd.s32 1, %s18
    $region7: #{tpu_custom_call.1} parent=1 // loop_footer_branch
      %17 = sbr.rel target = $region3
    $region8: #{tpu_custom_call.1} parent=1 // loop_exit
      _
    %295 = vsyncpa [#allocation3], 1
    %s296 = scalar_lea.sflag [#allocation3], 1
    %297 = vsyncpa %s296, 1
    %298 = vsyncpa [#allocation4], 1
    %s299 = scalar_lea.sflag [#allocation4], 1
    %300 = vsyncpa %s299, 1
    %301 = vsyncpa [#allocation7], 1
    %s302 = scalar_lea.sflag [#allocation7], 1
    %303 = vsyncpa %s302, 1

// kernel: tpu_custom_call.1
$region0: #{tpu_custom_call.1}
  #allocation0 [shape = 'u32[]', space=smem, size = 0x4, offset = 0x4, fixed_abs, tag = 'smem constant byte address 0x4 - core index']
  #allocation1 [shape = 'u32[144,128]{1,0:T(1,128)}', space=vmem, size = 0x12000, scoped, tag = 'internal scratch']
  %s0 = inlined_call_operand.hbm [shape: f32[96,128], index: 0, kind: input, shape index: {}]
  %s1 = inlined_call_operand.hbm [shape: f32[16,128], index: 1, kind: output, shape index: {0}]
  %s2 = inlined_call_operand.hbm [shape: f32[16,128], index: 2, kind: output, shape index: {1}]
  %3 = xla_tuple %s1, %s2
  %s4 = sld [smem:[#allocation0]]
  $region53: #{tpu_custom_call.1} parent=0
    _
  %s6 = ssub.s32 1, %s4
  %s7 = scalar_select 0, %s6, %s4
  $region1: #{tpu_custom_call.1} parent=0
    #allocation2 [shape = 'u8[49152]{0}', space=vmem, size = 0xc000, scoped, tag = 'input window, operand 0']
    #allocation3 [shape = 's32[2]{0}', space=sflag, size = 0x8, scoped, tag = 'scoped memory for tpu_custom_call.1']
    #allocation4 [shape = 's32[2]{0}', space=sflag, size = 0x8, scoped, tag = 'scoped memory for tpu_custom_call.1']
    #allocation5 [shape = 'u8[8192]{0}', space=vmem, size = 0x2000, scoped, tag = 'output window, operand 0']
    #allocation6 [shape = 'u8[8192]{0}', space=vmem, size = 0x2000, scoped, tag = 'output window, operand 1']
    #allocation7 [shape = 's32[2]{0}', space=sflag, size = 0x8, scoped, tag = 'scoped memory for tpu_custom_call.1']
    %8 = vsyncpa [#allocation3], 0
    %s9 = scalar_lea.sflag [#allocation3], 1
    %10 = vsyncpa %s9, 0
    %11 = vsyncpa [#allocation4], 0
    %s12 = scalar_lea.sflag [#allocation4], 1
    %13 = vsyncpa %s12, 0
    %14 = vsyncpa [#allocation7], 0
    %s15 = scalar_lea.sflag [#allocation7], 1
    %16 = vsyncpa %s15, 0
    loop: start=0, step=1, limit=4
    $region2: #{tpu_custom_call.1} parent=1 // loop_pre_header
      _
    $region3: #{tpu_custom_call.1} parent=1 // loop_header
      %s18 = sphi 0, %s22
      %p19 = scmp.ge.s32.totalorder %s18, 4
      %s25 = sphi 0, %s37
      %s26 = sphi 0, %s33
      %s27 = sphi 0, %s25
      %s28 = sphi 0, %s26
      %s29 = sphi 0, %s27
      %s30 = sphi 0, %s28
      %s42 = sphi 0, %s44
      %s45 = sphi 0, %s42
      %s46 = sphi 0, %s45
      %s62 = sphi 0, %s46
      %s68 = sphi 0, %s70
      %s71 = sphi 0, %s68
      %s72 = sphi 0, %s71
      %s88 = sphi 0, %s72
      %s94 = sphi 0, %s96
      %s97 = sphi 0, %s94
      %s98 = sphi 0, %s97
      %s114 = sphi 0, %s98
    $region4: #{tpu_custom_call.1} parent=1 // loop_header_branch
      %21 = sbr.rel (%p19) target = $region8
    $region5: #{tpu_custom_call.1} parent=1 // loop_body
      %s23 = ssub.s32 %s18, 1
      %s24 = ssub.s32 %s18, 2
      %s31 = sadd.s32 1, %s26
      %p32 = scmp.ge.s32.totalorder %s31, 1
      %s33 = scalar_select %p32, 0, %s31
      %s34 = sadd.s32 1, %s25
      %s35 = scalar_select %p32, %s34, %s25
      %p36 = scmp.ge.s32.totalorder %s35, 2
      %s37 = scalar_select %p36, 0, %s35
      %s38 = sadd.s32 %s25, %s26
      %s39 = sadd.s32 %s37, %s33
      %s40 = ssub.s32 %s38, %s39
      %p41 = scmp.eq.s32.totalorder %s40, 0
      %s43 = sadd.s32 %s42, 1
      %s44 = scalar_select %p41, %s42, %s43
      %p47 = pneg %p41
      %p48 = scmp.eq.s32.totalorder %s18, 1
      %p49 = por %p47, %p48
      %p50 = scmp.ne.s32.totalorder %s42, %s45
      %p51 = scmp.eq.s32.totalorder %s18, 0
      %p52 = por %p50, %p51
      %p53 = scmp.ne.s32.totalorder %s42, %s45
      %p54 = scmp.eq.s32.totalorder %s23, 1
      %p55 = por %p53, %p54
      %p56 = scmp.ne.s32.totalorder %s45, %s46
      %p57 = scmp.eq.s32.totalorder %s23, 0
      %p58 = por %p56, %p57
      %p59 = scmp.ne.s32.totalorder %s45, %s46
      %p60 = scmp.eq.s32.totalorder %s24, 1
      %p61 = por %p59, %p60
      %p63 = scmp.ne.s32.totalorder %s46, %s62
      %p64 = scmp.eq.s32.totalorder %s24, 0
      %p65 = por %p63, %p64
      %s66 = ssub.s32 %s25, %s37
      %p67 = scmp.eq.s32.totalorder %s66, 0
      %s69 = sadd.s32 %s68, 1
      %s70 = scalar_select %p67, %s68, %s69
      %p73 = pneg %p67
      %p74 = scmp.eq.s32.totalorder %s18, 1
      %p75 = por %p73, %p74
      %p76 = scmp.ne.s32.totalorder %s68, %s71
      %p77 = scmp.eq.s32.totalorder %s18, 0
      %p78 = por %p76, %p77
      %p79 = scmp.ne.s32.totalorder %s68, %s71
      %p80 = scmp.eq.s32.totalorder %s23, 1
      %p81 = por %p79, %p80
      %p82 = scmp.ne.s32.totalorder %s71, %s72
      %p83 = scmp.eq.s32.totalorder %s23, 0
      %p84 = por %p82, %p83
      %p85 = scmp.ne.s32.totalorder %s71, %s72
      %p86 = scmp.eq.s32.totalorder %s24, 1
      %p87 = por %p85, %p86
      %p89 = scmp.ne.s32.totalorder %s72, %s88
      %p90 = scmp.eq.s32.totalorder %s24, 0
      %p91 = por %p89, %p90
      %s92 = ssub.s32 %s25, %s37
      %p93 = scmp.eq.s32.totalorder %s92, 0
      %s95 = sadd.s32 %s94, 1
      %s96 = scalar_select %p93, %s94, %s95
      %p99 = pneg %p93
      %p100 = scmp.eq.s32.totalorder %s18, 1
      %p101 = por %p99, %p100
      %p102 = scmp.ne.s32.totalorder %s94, %s97
      %p103 = scmp.eq.s32.totalorder %s18, 0
      %p104 = por %p102, %p103
      %p105 = scmp.ne.s32.totalorder %s94, %s97
      %p106 = scmp.eq.s32.totalorder %s23, 1
      %p107 = por %p105, %p106
      %p108 = scmp.ne.s32.totalorder %s97, %s98
      %p109 = scmp.eq.s32.totalorder %s23, 0
      %p110 = por %p108, %p109
      %p111 = scmp.ne.s32.totalorder %s97, %s98
      %p112 = scmp.eq.s32.totalorder %s24, 1
      %p113 = por %p111, %p112
      %p115 = scmp.ne.s32.totalorder %s98, %s114
      %p116 = scmp.eq.s32.totalorder %s24, 0
      %p117 = por %p115, %p116
      %p118 = scmp.le.s32.totalorder 1, %s18
      %p119 = scmp.lt.s32.totalorder %s18, 3
      %p120 = pnand %p118, %p119
      %p121 = pneg %p120
      // Predicated region
      $region9: #{tpu_custom_call.1} parent=5 // pred_check
        _
      $region10: #{tpu_custom_call.1} parent=5 // pred_check_branch
        %123 = sbr.rel (%p120) target = $region12
      $region11: #{tpu_custom_call.1} parent=5 // pred_region
        %s124 = ssub.s32 %s18, 1
      $region12: #{tpu_custom_call.1} parent=5 // pred_fallthru
        _
      %p125 = scmp.lt.s32.totalorder %s18, 2
      // Predicated region
      $region13: #{tpu_custom_call.1} parent=5 // pred_check
        %p126 = pneg %p125
      $region14: #{tpu_custom_call.1} parent=5 // pred_check_branch
        %128 = sbr.rel (%p126) target = $region16
      $region15: #{tpu_custom_call.1} parent=5 // pred_region
        // Predicated region
        $region17: #{tpu_custom_call.1} parent=15 // pred_check
          %p129 = pneg %p52
        $region18: #{tpu_custom_call.1} parent=15 // pred_check_branch
          %131 = sbr.rel (%p129) target = $region20
        $region19: #{tpu_custom_call.1} parent=15 // pred_region
          %s132 = sand.u32 %s42, 1
          %s133 = scalar_lea.sflag [#allocation3], %s132
          %s134 = sand.u32 %s42, 1
          %s135 = smul.addr %s134, 48
          %s136 = scalar_lea.vmem [#allocation2], %s135
          %s137 = sadd.s32 %s25, %s26
          %s138 = smul.u32 6, %s137
          %s140 = ssub.s32 768, 768
          %141 = vsyncadd %s133, %s140
          %s142 = smul.addr %s138, 128
          %s143 = scalar_lea.hbm %s0, %s142
          %s144 = sshll.u32 %s136, 4
          %s145 = int_to_ptr.vmem [resolvable:$true] %s144
          %150 = dma.hbm_to_vmem [thread:$0]  %s143, 768, %s145, %s133, 128, 128, 8
        $region20: #{tpu_custom_call.1} parent=15 // pred_fallthru
          _
      $region16: #{tpu_custom_call.1} parent=5 // pred_fallthru
        _
      %p151 = scmp.le.s32.totalorder 1, %s18
      %p152 = scmp.lt.s32.totalorder %s18, 3
      %p153 = pnand %p151, %p152
      %p154 = pneg %p153
      // Predicated region
      $region21: #{tpu_custom_call.1} parent=5 // pred_check
        _
      $region22: #{tpu_custom_call.1} parent=5 // pred_check_branch
        %156 = sbr.rel (%p153) target = $region24
      $region23: #{tpu_custom_call.1} parent=5 // pred_region
        %s157 = ssub.s32 %s18, 1
        %s158 = sand.u32 %s45, 1
        %s159 = scalar_lea.sflag [#allocation3], %s158
        %s160 = sand.u32 %s45, 1
        %s161 = smul.addr %s160, 48
        %s162 = scalar_lea.vmem [#allocation2], %s161
        // Predicated region
        $region25: #{tpu_custom_call.1} parent=23 // pred_check
          %p163 = pneg %p58
        $region26: #{tpu_custom_call.1} parent=23 // pred_check_branch
          %165 = sbr.rel (%p163) target = $region28
        $region27: #{tpu_custom_call.1} parent=23 // pred_region
          %166 = dma.done %s159, 768
        $region28: #{tpu_custom_call.1} parent=23 // pred_fallthru
          _
        %s167 = sand.u32 %s45, 1
        %s168 = scalar_lea.sflag [#allocation3], %s167
        %s169 = sand.u32 %s45, 1
        %s170 = smul.addr %s169, 48
        %s171 = scalar_lea.vmem [#allocation2], %s170
        %p172 = pneg %p58
        %p173 = pneg %p55
        %p174 = pneg %p84
        %p175 = pneg %p81
        %s176 = sand.u32 %s71, 1
        %s177 = scalar_lea.sflag [#allocation4], %s176
        %s178 = sand.u32 %s71, 1
        %s179 = smul.addr %s178, 8
        %s180 = scalar_lea.vmem [#allocation5], %s179
        %p181 = pneg %p110
        %p182 = pneg %p107
        %s183 = sand.u32 %s97, 1
        %s184 = scalar_lea.sflag [#allocation7], %s183
        %s185 = sand.u32 %s97, 1
        %s186 = smul.addr %s185, 8
        %s187 = scalar_lea.vmem [#allocation6], %s186
        %s188 = sadd.s32 %s27, %s28
        %s189 = smul.u32 6, %s188
        %p190 = scmp.eq.s32.totalorder %s28, 0
        // Predicated region
        $region29: #{tpu_custom_call.1} parent=23 // pred_check
          %p191 = pneg %p190
        $region30: #{tpu_custom_call.1} parent=23 // pred_check_branch
          %193 = sbr.rel (%p191) target = $region32
        $region31: #{tpu_custom_call.1} parent=23 // pred_region
          %194 = vst [vmem:[%s180] sm:$0xff] 0.0
          %195 = vst [vmem:[%s187] sm:$0xff] 0.0
        $region32: #{tpu_custom_call.1} parent=23 // pred_fallthru
          _
        %v196 = vld [vmem:[%s162] sm:$0xff]
        %v197 = vld [vmem:[%s162 + $0x8] sm:$0xff]
        %v198 = vld [vmem:[%s162 + $0x10] sm:$0xff]
        %v199 = vld [vmem:[%s162 + $0x18] sm:$0xff]
        %v200 = vld [vmem:[%s162 + $0x20] sm:$0xff]
        %v201 = vld [vmem:[%s162 + $0x28] sm:$0xff]
        %v202 = vld [vmem:[%s180] sm:$0xff]
        %v203 = vadd.f32 %v196, %v197
        %v204 = vadd.f32 %v203, %v198
        %v205 = vadd.f32 %v204, %v199
        %v206 = vadd.f32 %v205, %v200
        %v207 = vadd.f32 %v206, %v201
        %v208 = vrot.slane %v207, 4
        %v209 = vadd.f32 %v207, %v208
        %v210 = vrot.slane %v209, 2
        %v211 = vadd.f32 %v209, %v210
        %v212 = vrot.slane %v211, 1
        %v213 = vadd.f32 %v211, %v212
        %v214 = vadd.f32 %v202, %v213
        %215 = vst [vmem:[%s180] sm:$0xff] %v214
        %v216 = vld [vmem:[%s187] sm:$0xff]
        %v217 = vmul.f32 %v196, %v196
        %v218 = vmul.f32 %v197, %v197
        %v219 = vmul.f32 %v198, %v198
        %v220 = vmul.f32 %v199, %v199
        %v221 = vmul.f32 %v200, %v200
        %v222 = vmul.f32 %v201, %v201
        %v223 = vadd.f32 %v217, %v218
        %v224 = vadd.f32 %v223, %v219
        %v225 = vadd.f32 %v224, %v220
        %v226 = vadd.f32 %v225, %v221
        %v227 = vadd.f32 %v226, %v222
        %v228 = vrot.slane %v227, 4
        %v229 = vadd.f32 %v227, %v228
        %v230 = vrot.slane %v229, 2
        %v231 = vadd.f32 %v229, %v230
        %v232 = vrot.slane %v231, 1
        %v233 = vadd.f32 %v231, %v232
        %v234 = vadd.f32 %v216, %v233
        %235 = vst [vmem:[%s187] sm:$0xff] %v234
        %s236 = sand.u32 %s71, 1
        %s237 = scalar_lea.sflag [#allocation4], %s236
        %s238 = sand.u32 %s71, 1
        %s239 = smul.addr %s238, 8
        %s240 = scalar_lea.vmem [#allocation5], %s239
        %s241 = sand.u32 %s97, 1
        %s242 = scalar_lea.sflag [#allocation7], %s241
        %s243 = sand.u32 %s97, 1
        %s244 = smul.addr %s243, 8
        %s245 = scalar_lea.vmem [#allocation6], %s244
        // Predicated region
        $region33: #{tpu_custom_call.1} parent=23 // pred_check
          %p246 = pneg %p81
        $region34: #{tpu_custom_call.1} parent=23 // pred_check_branch
          %248 = sbr.rel (%p246) target = $region36
        $region35: #{tpu_custom_call.1} parent=23 // pred_region
          %s250 = ssub.s32 128, 128
          %251 = vsyncadd %s237, %s250
          %s252 = smul.addr %s27, 128
          %s253 = scalar_lea.hbm %s1, %s252
          %s255 = sshll.u32 %s240, 4
          %s256 = int_to_ptr.vmem [resolvable:$true] %s255
          %258 = dma.vmem_to_hbm [thread:$0]  %s256, 128, %s253, %s237
        $region36: #{tpu_custom_call.1} parent=23 // pred_fallthru
          _
        // Predicated region
        $region37: #{tpu_custom_call.1} parent=23 // pred_check
          %p259 = pneg %p107
        $region38: #{tpu_custom_call.1} parent=23 // pred_check_branch
          %261 = sbr.rel (%p259) target = $region40
        $region39: #{tpu_custom_call.1} parent=23 // pred_region
          %s263 = ssub.s32 128, 128
          %264 = vsyncadd %s242, %s263
          %s265 = smul.addr %s27, 128
          %s266 = scalar_lea.hbm %s2, %s265
          %s268 = sshll.u32 %s245, 4
          %s269 = int_to_ptr.vmem [resolvable:$true] %s268
          %271 = dma.vmem_to_hbm [thread:$0]  %s269, 128, %s266, %s242
        $region40: #{tpu_custom_call.1} parent=23 // pred_fallthru
          _
      $region24: #{tpu_custom_call.1} parent=5 // pred_fallthru
        _
      %p272 = scmp.le.s32.totalorder 2, %s18
      // Predicated region
      $region41: #{tpu_custom_call.1} parent=5 // pred_check
        %p273 = pneg %p272
      $region42: #{tpu_custom_call.1} parent=5 // pred_check_branch
        %275 = sbr.rel (%p273) target = $region44
      $region43: #{tpu_custom_call.1} parent=5 // pred_region
        %s276 = ssub.s32 %s18, 2
        // Predicated region
        $region45: #{tpu_custom_call.1} parent=43 // pred_check
          %p277 = pneg %p87
        $region46: #{tpu_custom_call.1} parent=43 // pred_check_branch
          %279 = sbr.rel (%p277) target = $region48
        $region47: #{tpu_custom_call.1} parent=43 // pred_region
          %s280 = sand.u32 %s72, 1
          %s281 = scalar_lea.sflag [#allocation4], %s280
          %s282 = sand.u32 %s72, 1
          %s283 = smul.addr %s282, 8
          %s284 = scalar_lea.vmem [#allocation5], %s283
          %285 = dma.done %s281, 128
        $region48: #{tpu_custom_call.1} parent=43 // pred_fallthru
          _
        // Predicated region
        $region49: #{tpu_custom_call.1} parent=43 // pred_check
          %p286 = pneg %p113
        $region50: #{tpu_custom_call.1} parent=43 // pred_check_branch
          %288 = sbr.rel (%p286) target = $region52
        $region51: #{tpu_custom_call.1} parent=43 // pred_region
          %s289 = sand.u32 %s98, 1
          %s290 = scalar_lea.sflag [#allocation7], %s289
          %s291 = sand.u32 %s98, 1
          %s292 = smul.addr %s291, 8
          %s293 = scalar_lea.vmem [#allocation6], %s292
          %294 = dma.done %s290, 128
        $region52: #{tpu_custom_call.1} parent=43 // pred_fallthru
          _
      $region44: #{tpu_custom_call.1} parent=5 // pred_fallthru
        _
    $region6: #{tpu_custom_call.1} parent=1 // loop_footer
      %s22 = sadd.s32 1, %s18
    $region7: #{tpu_custom_call.1} parent=1 // loop_footer_branch
      %17 = sbr.rel target = $region3
    $region8: #{tpu_custom_call.1} parent=1 // loop_exit
      _
    %295 = vsyncpa [#allocation3], 1
    %s296 = scalar_lea.sflag [#allocation3], 1
    %297 = vsyncpa %s296, 1
    %298 = vsyncpa [#allocation4], 1
    %s299 = scalar_lea.sflag [#allocation4], 1
    %300 = vsyncpa %s299, 1
    %301 = vsyncpa [#allocation7], 1
    %s302 = scalar_lea.sflag [#allocation7], 1
    %303 = vsyncpa %s302, 1

</llo_original>
